<compile_context>
chip_gen: v7x
topology: tpu7x:2x2x1
jax: 0.10.0
libtpu: 0.0.40
codegen_flags: <defaults>
</compile_context>

<pallas_src>
import jax
import jax.numpy as jnp
from jax.experimental import pallas as pl
from jax.experimental.pallas import tpu as pltpu


HIDDEN = 64                    # padded width of every activation / weight block
SLAB_ROWS = 80                 # 64 weight rows + one 16-row bf16 tile for biases
SLAB_COLS = 4 * HIDDEN
LAYER_DIMS = [(8, 32), (32, 64), (64, 64), (64, 3)]
N_OUT = 3


def classify_net_kernel(x_ref, p_ref, o_ref):
    """One batch tile of the full MLP forward pass.

    x_ref : [TB, 64]  f32   (features zero-padded 8 -> 64)
    p_ref : [80, 256] bf16  packed weights + biases (constant index_map ->
                            DMA'd once, stays VMEM-resident across batch tiles)
    o_ref : [TB, 3]   f32   sigmoid outputs
    """
    x = x_ref[...].astype(jnp.bfloat16)

    # Static ref slices of the packed slab (once per tile, cheap).
    w1 = p_ref[0:64, 0:64]
    w2 = p_ref[0:64, 64:128]
    w3 = p_ref[0:64, 128:192]
    w4 = p_ref[0:64, 192:256]
    # Bias row: load the aligned 16-row bf16 tile once, keep row 0; the f32
    # upcast is hoisted here so it is never repeated.
    brow = p_ref[64:80, :][0:1, :].astype(jnp.float32)      # [1, 256]
    b1 = brow[:, 0:64]
    b2 = brow[:, 64:128]
    b3 = brow[:, 128:192]
    b4 = brow[:, 192:256]

    # bf16 operands -> MXU fast path; accumulate in f32; relu/bias in f32.
    h = jnp.dot(x, w1, preferred_element_type=jnp.float32) + b1
    h = jnp.maximum(h, 0.0)
    h = jnp.dot(h.astype(jnp.bfloat16), w2, preferred_element_type=jnp.float32) + b2
    h = jnp.maximum(h, 0.0)
    h = jnp.dot(h.astype(jnp.bfloat16), w3, preferred_element_type=jnp.float32) + b3
    h = jnp.maximum(h, 0.0)
    logits = jnp.dot(h.astype(jnp.bfloat16), w4, preferred_element_type=jnp.float32) + b4
    logits = logits[:, 0:N_OUT]

    # sigmoid = 1 / (1 + exp(-x)): exp and the approximate reciprocal both run
    # on the otherwise-idle EUP slot.  Single masked [TB, 3] store per tile.
    o_ref[...] = pl.reciprocal(1.0 + jnp.exp(-logits), approx=True)


def classify_net_forward(x, param_slab, *, tb=256):
    """Run the MLP forward pass with a batch-tiled, parallel 1-D grid.

    x: [B, 8] f32.  param_slab: [80, 256] bf16 from pack_params().
    """
    B, F = x.shape
    n_tiles = pl.cdiv(B, tb)
    Bp = n_tiles * tb
    # Pad batch to a tile multiple and features to the uniform 64-wide layout.
    xp = jnp.pad(x, ((0, Bp - B), (0, HIDDEN - F)))

    out = pl.pallas_call(
        classify_net_kernel,
        out_shape=jax.ShapeDtypeStruct((Bp, N_OUT), jnp.float32),
        grid=(n_tiles,),
        in_specs=[
            pl.BlockSpec((tb, HIDDEN), lambda i: (i, 0)),            # batch tile
            pl.BlockSpec((SLAB_ROWS, SLAB_COLS), lambda i: (0, 0)),  # resident params
        ],
        out_specs=pl.BlockSpec((tb, N_OUT), lambda i: (i, 0)),
        compiler_params=pltpu.CompilerParams(
            dimension_semantics=("parallel",)),   # megacore-shardable on v7x
    )(xp, param_slab)
    return out[:B]


def init_params(key):
    """torch.nn.Linear-equivalent params: W stored [in, out] (pre-transposed),
    b stored [out]; init range matches torch's default U(-1/sqrt(fan_in), ...)."""
    params = {}
    for idx, (fan_in, fan_out) in enumerate(LAYER_DIMS, start=1):
        key, kw, kb = jax.random.split(key, 3)
        bound = 1.0 / jnp.sqrt(float(fan_in))
        params[f"w{idx}"] = jax.random.uniform(
            kw, (fan_in, fan_out), jnp.float32, -bound, bound)
        params[f"b{idx}"] = jax.random.uniform(
            kb, (fan_out,), jnp.float32, -bound, bound)
    return params


def pack_params(params):
    """Pack w1..w4 / b1..b4 into the single bf16 [80, 256] slab (see header)."""
    slab = jnp.zeros((SLAB_ROWS, SLAB_COLS), jnp.float32)
    for idx, (fan_in, fan_out) in enumerate(LAYER_DIMS, start=1):
        c0 = (idx - 1) * HIDDEN
        slab = slab.at[0:fan_in, c0:c0 + fan_out].set(params[f"w{idx}"])
        slab = slab.at[64, c0:c0 + fan_out].set(params[f"b{idx}"])
    return slab.astype(jnp.bfloat16)


def reference_forward(x, param_slab):
    """Pure-JAX reference using the same bf16-quantized weights/activations."""
    s = param_slab.astype(jnp.float32)
    blocks = [s[0:64, i * HIDDEN:(i + 1) * HIDDEN] for i in range(4)]
    biases = [s[64:65, i * HIDDEN:(i + 1) * HIDDEN] for i in range(4)]
    q = lambda a: a.astype(jnp.bfloat16).astype(jnp.float32)

    h = jnp.pad(x, ((0, 0), (0, HIDDEN - x.shape[1])))
    h = jnp.maximum(q(h) @ blocks[0] + biases[0], 0.0)
    h = jnp.maximum(q(h) @ blocks[1] + biases[1], 0.0)
    h = jnp.maximum(q(h) @ blocks[2] + biases[2], 0.0)
    logits = (q(h) @ blocks[3] + biases[3])[:, 0:N_OUT]
    return jax.nn.sigmoid(logits)


if __name__ == "__main__":
    key = jax.random.PRNGKey(0)
    key, kx = jax.random.split(key)

    B = 1024          # batch; input feature dim is 8 per classify_net.layer1
    x = jax.random.normal(kx, (B, 8), dtype=jnp.float32)

    params = init_params(key)
    slab = pack_params(params)

    out = classify_net_forward(x, slab, tb=256)
    out = jax.block_until_ready(out)

    ref = reference_forward(x, slab)
    assert out.shape == (B, N_OUT), out.shape
    assert jnp.allclose(out, ref, atol=5e-3, rtol=5e-3), "mismatch vs JAX reference"

    print("KERNEL_OK")
</pallas_src>

<mosaic_0001>
module attributes {stable_mosaic.version = 11 : i64} {
  func.func @classify_net_kernel(%arg0: i32, %arg1: memref<256x64xf32, #tpu.memory_space<vmem>>, %arg2: memref<80x256xbf16, #tpu.memory_space<vmem>>, %arg3: memref<256x3xf32, #tpu.memory_space<vmem>>) attributes {dimension_semantics = [#tpu.dimension_semantics<parallel>], iteration_bounds = array<i64: 4>, scalar_prefetch = 0 : i64, scratch_operands = 0 : i64, tpu.core_type = #tpu.core_type<tc>, window_params = [{transform_indices = @transform_0, window_bounds = array<i64: 256, 64>}, {pipeline_mode = #tpu.pipeline_mode<synchronous>, transform_indices = @transform_1, window_bounds = array<i64: 80, 256>}, {transform_indices = @transform_2, window_bounds = array<i64: 256, 3>}]} {
    %c0 = arith.constant 0 : index
    %c0_0 = arith.constant 0 : index
    %0 = vector.load %arg1[%c0, %c0_0] : memref<256x64xf32, #tpu.memory_space<vmem>>, vector<256x64xf32>
    %1 = arith.truncf %0 : vector<256x64xf32> to vector<256x64xbf16>
    %c0_1 = arith.constant 0 : index
    %c0_2 = arith.constant 0 : index
    %2 = vector.load %arg2[%c0_1, %c0_2] : memref<80x256xbf16, #tpu.memory_space<vmem>>, vector<64x64xbf16>
    %c0_3 = arith.constant 0 : index
    %c64 = arith.constant 64 : index
    %3 = vector.load %arg2[%c0_3, %c64] : memref<80x256xbf16, #tpu.memory_space<vmem>>, vector<64x64xbf16>
    %c0_4 = arith.constant 0 : index
    %c128 = arith.constant 128 : index
    %4 = vector.load %arg2[%c0_4, %c128] : memref<80x256xbf16, #tpu.memory_space<vmem>>, vector<64x64xbf16>
    %c0_5 = arith.constant 0 : index
    %c192 = arith.constant 192 : index
    %5 = vector.load %arg2[%c0_5, %c192] : memref<80x256xbf16, #tpu.memory_space<vmem>>, vector<64x64xbf16>
    %c64_6 = arith.constant 64 : index
    %c0_7 = arith.constant 0 : index
    %6 = vector.load %arg2[%c64_6, %c0_7] : memref<80x256xbf16, #tpu.memory_space<vmem>>, vector<16x256xbf16>
    %7 = vector.extract_strided_slice %6 {offsets = [0, 0], sizes = [1, 256], strides = [1, 1]} : vector<16x256xbf16> to vector<1x256xbf16>
    %8 = arith.extf %7 : vector<1x256xbf16> to vector<1x256xf32>
    %9 = vector.extract_strided_slice %8 {offsets = [0, 0], sizes = [1, 64], strides = [1, 1]} : vector<1x256xf32> to vector<1x64xf32>
    %10 = vector.extract_strided_slice %8 {offsets = [0, 64], sizes = [1, 64], strides = [1, 1]} : vector<1x256xf32> to vector<1x64xf32>
    %11 = vector.extract_strided_slice %8 {offsets = [0, 128], sizes = [1, 64], strides = [1, 1]} : vector<1x256xf32> to vector<1x64xf32>
    %12 = vector.extract_strided_slice %8 {offsets = [0, 192], sizes = [1, 64], strides = [1, 1]} : vector<1x256xf32> to vector<1x64xf32>
    %cst = arith.constant dense<0.000000e+00> : vector<256x64xf32>
    %13 = tpu.matmul %1, %2, %cst {dimension_numbers = #tpu.dot_dimension_numbers<[1], [0], [0], [1], [0, 0, 1, 1], [], []>} : vector<256x64xbf16>, vector<64x64xbf16>, vector<256x64xf32> -> vector<256x64xf32>
    %14 = vector.broadcast %9 : vector<1x64xf32> to vector<256x64xf32>
    %15 = arith.addf %13, %14 : vector<256x64xf32>
    %cst_8 = arith.constant 0.000000e+00 : f32
    %16 = vector.broadcast %cst_8 : f32 to vector<256x64xf32>
    %17 = arith.maximumf %15, %16 : vector<256x64xf32>
    %18 = arith.truncf %17 : vector<256x64xf32> to vector<256x64xbf16>
    %cst_9 = arith.constant dense<0.000000e+00> : vector<256x64xf32>
    %19 = tpu.matmul %18, %3, %cst_9 {dimension_numbers = #tpu.dot_dimension_numbers<[1], [0], [0], [1], [0, 0, 1, 1], [], []>} : vector<256x64xbf16>, vector<64x64xbf16>, vector<256x64xf32> -> vector<256x64xf32>
    %20 = vector.broadcast %10 : vector<1x64xf32> to vector<256x64xf32>
    %21 = arith.addf %19, %20 : vector<256x64xf32>
    %cst_10 = arith.constant 0.000000e+00 : f32
    %22 = vector.broadcast %cst_10 : f32 to vector<256x64xf32>
    %23 = arith.maximumf %21, %22 : vector<256x64xf32>
    %24 = arith.truncf %23 : vector<256x64xf32> to vector<256x64xbf16>
    %cst_11 = arith.constant dense<0.000000e+00> : vector<256x64xf32>
    %25 = tpu.matmul %24, %4, %cst_11 {dimension_numbers = #tpu.dot_dimension_numbers<[1], [0], [0], [1], [0, 0, 1, 1], [], []>} : vector<256x64xbf16>, vector<64x64xbf16>, vector<256x64xf32> -> vector<256x64xf32>
    %26 = vector.broadcast %11 : vector<1x64xf32> to vector<256x64xf32>
    %27 = arith.addf %25, %26 : vector<256x64xf32>
    %cst_12 = arith.constant 0.000000e+00 : f32
    %28 = vector.broadcast %cst_12 : f32 to vector<256x64xf32>
    %29 = arith.maximumf %27, %28 : vector<256x64xf32>
    %30 = arith.truncf %29 : vector<256x64xf32> to vector<256x64xbf16>
    %cst_13 = arith.constant dense<0.000000e+00> : vector<256x64xf32>
    %31 = tpu.matmul %30, %5, %cst_13 {dimension_numbers = #tpu.dot_dimension_numbers<[1], [0], [0], [1], [0, 0, 1, 1], [], []>} : vector<256x64xbf16>, vector<64x64xbf16>, vector<256x64xf32> -> vector<256x64xf32>
    %32 = vector.broadcast %12 : vector<1x64xf32> to vector<256x64xf32>
    %33 = arith.addf %31, %32 : vector<256x64xf32>
    %34 = vector.extract_strided_slice %33 {offsets = [0, 0], sizes = [256, 3], strides = [1, 1]} : vector<256x64xf32> to vector<256x3xf32>
    %cst_14 = arith.constant 0.000000e+00 : f32
    %35 = vector.broadcast %cst_14 : f32 to vector<256x3xf32>
    %36 = arith.subf %35, %34 : vector<256x3xf32>
    %37 = math.exp %36 : vector<256x3xf32>
    %cst_15 = arith.constant 1.000000e+00 : f32
    %38 = vector.broadcast %cst_15 : f32 to vector<256x3xf32>
    %39 = arith.addf %38, %37 : vector<256x3xf32>
    %40 = tpu.reciprocal %39 {approx = true} : vector<256x3xf32> -> vector<256x3xf32>
    %c0_16 = arith.constant 0 : index
    %c0_17 = arith.constant 0 : index
    %41 = vector.load %arg3[%c0_16, %c0_17] : memref<256x3xf32, #tpu.memory_space<vmem>>, vector<256x3xf32>
    tpu.vector_store %arg3[%c0_16, %c0_17], %40 {strides = array<i32>} : memref<256x3xf32, #tpu.memory_space<vmem>>, vector<256x3xf32>,
    return
  }
  func.func @transform_0(%arg0: i32) -> (i32, i32) {
    %c0_i32 = arith.constant 0 : i32
    %c0_i32_0 = arith.constant 0 : i32
    return %arg0, %c0_i32 : i32, i32
  }
  func.func @transform_1(%arg0: i32) -> (i32, i32) {
    %c0_i32 = arith.constant 0 : i32
    %c0_i32_0 = arith.constant 0 : i32
    %c0_i32_1 = arith.constant 0 : i32
    return %c0_i32, %c0_i32_0 : i32, i32
  }
  func.func @transform_2(%arg0: i32) -> (i32, i32) {
    %c0_i32 = arith.constant 0 : i32
    %c0_i32_0 = arith.constant 0 : i32
    return %arg0, %c0_i32 : i32, i32
  }
}

</mosaic_0001>

<llo_original>
// kernel: tpu_custom_call.1
$region0: #{tpu_custom_call.1}
  #allocation0 [shape = 'u32[]', space=smem, size = 0x4, offset = 0x4, fixed_abs, tag = 'smem constant byte address 0x4 - core index']
  #allocation1 [shape = 'u32[144,128]{1,0:T(1,128)}', space=vmem, size = 0x12000, scoped, tag = 'internal scratch']
  %s0 = inlined_call_operand.vmem [shape: f32[1024,64], index: 0, kind: input, shape index: {}]
  %s1 = inlined_call_operand.vmem [shape: bf16[80,256], index: 1, kind: input, shape index: {}]
  %s2 = inlined_call_operand.vmem [shape: f32[1024,3], index: 2, kind: output, shape index: {}]
  %s3 = sld [smem:[#allocation0]]
  $region41: #{tpu_custom_call.1} parent=0
    _
  %s5 = ssub.s32 1, %s3
  %s6 = scalar_select 0, %s5, %s3
  loop: start=0, step=1, limit=6
  $region2: #{tpu_custom_call.1} parent=0 // loop_pre_header
    _
  $region3: #{tpu_custom_call.1} parent=0 // loop_header
    %s8 = sphi 0, %s12
    %p9 = scmp.ge.s32.totalorder %s8, 6
    %s18 = sphi 0, %s20
    %s21 = sphi 0, %s18
    %s22 = sphi 0, %s21
    %s38 = sphi 0, %s22
    %s42 = sphi 0, %s42
    %s44 = sphi 0, %s42
    %s45 = sphi 0, %s44
    %s59 = sphi 0, %s45
    %s65 = sphi 0, %s67
    %s68 = sphi 0, %s65
    %s69 = sphi 0, %s68
    %s85 = sphi 0, %s69
  $region4: #{tpu_custom_call.1} parent=0 // loop_header_branch
    %11 = sbr.rel (%p9) target = $region8
  $region5: #{tpu_custom_call.1} parent=0 // loop_body
    %s13 = ssub.s32 %s8, 1
    %s14 = ssub.s32 %s8, 2
    %s15 = sadd.s32 %s8, 1
    %s16 = ssub.s32 %s8, %s15
    %p17 = scmp.eq.s32.totalorder %s16, 0
    %s19 = sadd.s32 %s18, 1
    %s20 = scalar_select %p17, %s18, %s19
    %p23 = pneg %p17
    %p24 = scmp.eq.s32.totalorder %s8, 3
    %p25 = por %p23, %p24
    %p26 = scmp.ne.s32.totalorder %s18, %s21
    %p27 = scmp.eq.s32.totalorder %s8, 0
    %p28 = por %p26, %p27
    %p29 = scmp.ne.s32.totalorder %s18, %s21
    %p30 = scmp.eq.s32.totalorder %s13, 3
    %p31 = por %p29, %p30
    %p32 = scmp.ne.s32.totalorder %s21, %s22
    %p33 = scmp.eq.s32.totalorder %s13, 0
    %p34 = por %p32, %p33
    %p35 = scmp.ne.s32.totalorder %s21, %s22
    %p36 = scmp.eq.s32.totalorder %s14, 3
    %p37 = por %p35, %p36
    %p39 = scmp.ne.s32.totalorder %s22, %s38
    %p40 = scmp.eq.s32.totalorder %s14, 0
    %p41 = por %p39, %p40
    %s43 = sadd.s32 %s42, 1
    %p46 = scmp.eq.s32.totalorder %s8, 3
    %p47 = scmp.ne.s32.totalorder %s42, %s44
    %p48 = scmp.eq.s32.totalorder %s8, 0
    %p49 = por %p47, %p48
    %p50 = scmp.ne.s32.totalorder %s42, %s44
    %p51 = scmp.eq.s32.totalorder %s13, 3
    %p52 = por %p50, %p51
    %p53 = scmp.ne.s32.totalorder %s44, %s45
    %p54 = scmp.eq.s32.totalorder %s13, 0
    %p55 = por %p53, %p54
    %p56 = scmp.ne.s32.totalorder %s44, %s45
    %p57 = scmp.eq.s32.totalorder %s14, 3
    %p58 = por %p56, %p57
    %p60 = scmp.ne.s32.totalorder %s45, %s59
    %p61 = scmp.eq.s32.totalorder %s14, 0
    %p62 = por %p60, %p61
    %s63 = ssub.s32 %s8, %s15
    %p64 = scmp.eq.s32.totalorder %s63, 0
    %s66 = sadd.s32 %s65, 1
    %s67 = scalar_select %p64, %s65, %s66
    %p70 = pneg %p64
    %p71 = scmp.eq.s32.totalorder %s8, 3
    %p72 = por %p70, %p71
    %p73 = scmp.ne.s32.totalorder %s65, %s68
    %p74 = scmp.eq.s32.totalorder %s8, 0
    %p75 = por %p73, %p74
    %p76 = scmp.ne.s32.totalorder %s65, %s68
    %p77 = scmp.eq.s32.totalorder %s13, 3
    %p78 = por %p76, %p77
    %p79 = scmp.ne.s32.totalorder %s68, %s69
    %p80 = scmp.eq.s32.totalorder %s13, 0
    %p81 = por %p79, %p80
    %p82 = scmp.ne.s32.totalorder %s68, %s69
    %p83 = scmp.eq.s32.totalorder %s14, 3
    %p84 = por %p82, %p83
    %p86 = scmp.ne.s32.totalorder %s69, %s85
    %p87 = scmp.eq.s32.totalorder %s14, 0
    %p88 = por %p86, %p87
    %p89 = scmp.le.s32.totalorder 1, %s8
    %p90 = scmp.lt.s32.totalorder %s8, 5
    %p91 = pnand %p89, %p90
    %p92 = pneg %p91
    // Predicated region
    $region9: #{tpu_custom_call.1} parent=5 // pred_check
      _
    $region10: #{tpu_custom_call.1} parent=5 // pred_check_branch
      %94 = sbr.rel (%p91) target = $region12
    $region11: #{tpu_custom_call.1} parent=5 // pred_region
      %s95 = ssub.s32 %s8, 1
      // Predicated region
      $region13: #{tpu_custom_call.1} parent=11 // pred_check
        %p96 = pneg %p55
      $region14: #{tpu_custom_call.1} parent=11 // pred_check_branch
        %98 = sbr.rel (%p96) target = $region16
      $region15: #{tpu_custom_call.1} parent=11 // pred_region
        _
      $region16: #{tpu_custom_call.1} parent=11 // pred_fallthru
        _
    $region12: #{tpu_custom_call.1} parent=5 // pred_fallthru
      _
    %p99 = scmp.lt.s32.totalorder %s8, 4
    // Predicated region
    $region17: #{tpu_custom_call.1} parent=5 // pred_check
      %p100 = pneg %p99
    $region18: #{tpu_custom_call.1} parent=5 // pred_check_branch
      %102 = sbr.rel (%p100) target = $region20
    $region19: #{tpu_custom_call.1} parent=5 // pred_region
      // Predicated region
      $region21: #{tpu_custom_call.1} parent=19 // pred_check
        %p103 = pneg %p28
      $region22: #{tpu_custom_call.1} parent=19 // pred_check_branch
        %105 = sbr.rel (%p103) target = $region24
      $region23: #{tpu_custom_call.1} parent=19 // pred_region
        %s106 = smul.u32 32, %s8
        %p107 = scmp.lt.s32.totalorder %s106, 127
        %s108 = scalar_select %p107, %s106, 127
        %s109 = smul.addr %s108, 8
        %s110 = scalar_lea.vmem %s0, %s109
        %s111 = smul.u32 32, %s8
      $region24: #{tpu_custom_call.1} parent=19 // pred_fallthru
        _
    $region20: #{tpu_custom_call.1} parent=5 // pred_fallthru
      _
    %p112 = scmp.le.s32.totalorder 1, %s8
    %p113 = scmp.lt.s32.totalorder %s8, 5
    %p114 = pnand %p112, %p113
    %p115 = pneg %p114
    // Predicated region
    $region25: #{tpu_custom_call.1} parent=5 // pred_check
      _
    $region26: #{tpu_custom_call.1} parent=5 // pred_check_branch
      %117 = sbr.rel (%p114) target = $region28
    $region27: #{tpu_custom_call.1} parent=5 // pred_region
      %s118 = ssub.s32 %s8, 1
      %s119 = smul.u32 32, %s13
      %p120 = scmp.lt.s32.totalorder %s119, 127
      %s121 = scalar_select %p120, %s119, 127
      %s122 = smul.addr %s121, 8
      %s123 = scalar_lea.vmem %s0, %s122
      %p124 = pneg %p34
      %p125 = pneg %p31
      %p126 = pneg %p55
      %p127 = pneg %p52
      %p128 = pneg %p81
      %p129 = pneg %p78
      %s130 = smul.u32 32, %s13
      %p131 = scmp.lt.s32.totalorder %s130, 127
      %s132 = scalar_select %p131, %s130, 127
      %s133 = smul.addr %s132, 8
      %s134 = scalar_lea.vmem %s2, %s133
      %s135 = smul.u32 32, %s13
      %p136 = scmp.lt.s32.totalorder %s135, 127
      %s137 = scalar_select %p136, %s135, 127
      %s138 = smul.addr %s137, 8
      %s139 = scalar_lea.vmem %s0, %s138
      %s140 = smul.u32 32, %s13
      %s141 = smul.u32 32, %s13
      %p142 = scmp.lt.s32.totalorder %s141, 127
      %s143 = scalar_select %p142, %s141, 127
      %s144 = smul.addr %s143, 8
      %s145 = scalar_lea.vmem %s2, %s144
      %s146 = smul.u32 32, %s13
      %v148 = vld [vmem:[%s139] sm:$0xff]
      %v149 = vld [vmem:[%s139 + $0x8] sm:$0xff]
      %v150 = vld [vmem:[%s139 + $0x10] sm:$0xff]
      %v151 = vld [vmem:[%s139 + $0x18] sm:$0xff]
      %v152 = vld [vmem:[%s139 + $0x20] sm:$0xff]
      %v153 = vld [vmem:[%s139 + $0x28] sm:$0xff]
      %v154 = vld [vmem:[%s139 + $0x30] sm:$0xff]
      %v155 = vld [vmem:[%s139 + $0x38] sm:$0xff]
      %v156 = vld [vmem:[%s139 + $0x40] sm:$0xff]
      %v157 = vld [vmem:[%s139 + $0x48] sm:$0xff]
      %v158 = vld [vmem:[%s139 + $0x50] sm:$0xff]
      %v159 = vld [vmem:[%s139 + $0x58] sm:$0xff]
      %v160 = vld [vmem:[%s139 + $0x60] sm:$0xff]
      %v161 = vld [vmem:[%s139 + $0x68] sm:$0xff]
      %v162 = vld [vmem:[%s139 + $0x70] sm:$0xff]
      %v163 = vld [vmem:[%s139 + $0x78] sm:$0xff]
      %v164 = vld [vmem:[%s139 + $0x80] sm:$0xff]
      %v165 = vld [vmem:[%s139 + $0x88] sm:$0xff]
      %v166 = vld [vmem:[%s139 + $0x90] sm:$0xff]
      %v167 = vld [vmem:[%s139 + $0x98] sm:$0xff]
      %v168 = vld [vmem:[%s139 + $0xa0] sm:$0xff]
      %v169 = vld [vmem:[%s139 + $0xa8] sm:$0xff]
      %v170 = vld [vmem:[%s139 + $0xb0] sm:$0xff]
      %v171 = vld [vmem:[%s139 + $0xb8] sm:$0xff]
      %v172 = vld [vmem:[%s139 + $0xc0] sm:$0xff]
      %v173 = vld [vmem:[%s139 + $0xc8] sm:$0xff]
      %v174 = vld [vmem:[%s139 + $0xd0] sm:$0xff]
      %v175 = vld [vmem:[%s139 + $0xd8] sm:$0xff]
      %v176 = vld [vmem:[%s139 + $0xe0] sm:$0xff]
      %v177 = vld [vmem:[%s139 + $0xe8] sm:$0xff]
      %v178 = vld [vmem:[%s139 + $0xf0] sm:$0xff]
      %v179 = vld [vmem:[%s139 + $0xf8] sm:$0xff]
      %v180 = vpack.c.bf16 %v149, %v148
      %v181 = vpack.c.bf16 %v151, %v150
      %v182 = vpack.c.bf16 %v153, %v152
      %v183 = vpack.c.bf16 %v155, %v154
      %v184 = vpack.c.bf16 %v157, %v156
      %v185 = vpack.c.bf16 %v159, %v158
      %v186 = vpack.c.bf16 %v161, %v160
      %v187 = vpack.c.bf16 %v163, %v162
      %v188 = vpack.c.bf16 %v165, %v164
      %v189 = vpack.c.bf16 %v167, %v166
      %v190 = vpack.c.bf16 %v169, %v168
      %v191 = vpack.c.bf16 %v171, %v170
      %v192 = vpack.c.bf16 %v173, %v172
      %v193 = vpack.c.bf16 %v175, %v174
      %v194 = vpack.c.bf16 %v177, %v176
      %v195 = vpack.c.bf16 %v179, %v178
      %v196 = vld [vmem:[%s1] sm:$0xf]
      %v197 = vld [vmem:[%s1 + $0x8] sm:$0xf]
      %v198 = vld [vmem:[%s1 + $0x10] sm:$0xf]
      %v199 = vld [vmem:[%s1 + $0x18] sm:$0xf]
      %v200 = vld [vmem:[%s1 + $0x20] sm:$0xf]
      %v201 = vld [vmem:[%s1 + $0x28] sm:$0xf]
      %v202 = vld [vmem:[%s1 + $0x30] sm:$0xf]
      %v203 = vld [vmem:[%s1 + $0x38] sm:$0xf]
      %v204 = vld [vmem:[%s1 + $0x4] sm:$0xf]
      %v205 = vld [vmem:[%s1 + $0xc] sm:$0xf]
      %v206 = vld [vmem:[%s1 + $0x14] sm:$0xf]
      %v207 = vld [vmem:[%s1 + $0x1c] sm:$0xf]
      %v208 = vld [vmem:[%s1 + $0x24] sm:$0xf]
      %v209 = vld [vmem:[%s1 + $0x2c] sm:$0xf]
      %v210 = vld [vmem:[%s1 + $0x34] sm:$0xf]
      %v211 = vld [vmem:[%s1 + $0x3c] sm:$0xf]
      %v212 = vld [vmem:[%s1 + $0x40] sm:$0xff]
      %v213 = vunpack.c.l.bf16 %v212
      %v214 = vunpack.c.h.bf16 %v212
      %v215 = vlaneseq
      %v216 = vshrl.u32 %v215, 7
      %v217 = vsub.s32 0, %v216
      %v218 = vrot.slane %v213, %v217
      %v227 = vunpack.c.l.b16 %v196
      %v228 = vunpack.c.l.b16 %v197
      %v229 = vunpack.c.l.b16 %v198
      %v230 = vunpack.c.l.b16 %v199
      %v231 = vunpack.c.l.b16 %v200
      %v232 = vunpack.c.l.b16 %v201
      %v233 = vunpack.c.l.b16 %v202
      %v234 = vunpack.c.l.b16 %v203
      %v235 = vpack.c.b16 %v228, %v227
      %v236 = vpack.c.b16 %v230, %v229
      %v237 = vpack.c.b16 %v232, %v231
      %v238 = vpack.c.b16 %v234, %v233
      %vm243 = vcmask 523264
      %v245 = vsel %vm243, %v180, 0
      %v248 = vsel %vm243, %v181, 0
      %v251 = vsel %vm243, %v182, 0
      %v254 = vsel %vm243, %v183, 0
      %v257 = vsel %vm243, %v184, 0
      %v260 = vsel %vm243, %v185, 0
      %v263 = vsel %vm243, %v186, 0
      %v266 = vsel %vm243, %v187, 0
      %v269 = vsel %vm243, %v188, 0
      %v272 = vsel %vm243, %v189, 0
      %v275 = vsel %vm243, %v190, 0
      %v278 = vsel %vm243, %v191, 0
      %v281 = vsel %vm243, %v192, 0
      %v284 = vsel %vm243, %v193, 0
      %v287 = vsel %vm243, %v194, 0
      %v290 = vsel %vm243, %v195, 0
      %292 = vmatprep.subr.bf16.mxu0 0
      %293 = vmatpush1.bf16.msra.mxu0 %v235
      %294 = vmatprep.subr.bf16.mxu0 0
      %295 = vmatpush1.bf16.msra.mxu0 %v236
      %296 = vmatprep.subr.bf16.mxu0 0
      %297 = vmatpush1.bf16.msra.mxu0 %v237
      %298 = vmatprep.subr.bf16.mxu0 0
      %299 = vmatpush1.bf16.msra.mxu0 %v238
      %300 = vmatprep.subr.bf16.mxu0 0
      %301 = vmatpush1.bf16.msra.mxu0 0
      %302 = vmatprep.subr.bf16.mxu0 0
      %303 = vmatpush1.bf16.msra.mxu0 0
      %304 = vmatprep.subr.bf16.mxu0 0
      %305 = vmatpush1.bf16.msra.mxu0 0
      %306 = vmatprep.subr.bf16.mxu0 0
      %307 = vmatpush1.bf16.msra.mxu0 0
      %308 = vmatprep.subr.bf16.mxu0 0
      %309 = vmatpush1.bf16.msra.mxu0 0
      %310 = vmatprep.subr.bf16.mxu0 0
      %311 = vmatpush1.bf16.msra.mxu0 0
      %312 = vmatprep.subr.bf16.mxu0 0
      %313 = vmatpush1.bf16.msra.mxu0 0
      %314 = vmatprep.subr.bf16.mxu0 0
      %315 = vmatpush1.bf16.msra.mxu0 0
      %316 = vmatprep.subr.bf16.mxu0 0
      %317 = vmatpush1.bf16.msra.mxu0 0
      %318 = vmatprep.subr.bf16.mxu0 0
      %319 = vmatpush1.bf16.msra.mxu0 0
      %320 = vmatprep.subr.bf16.mxu0 0
      %321 = vmatpush1.bf16.msra.mxu0 0
      %322 = vmatprep.subr.bf16.mxu0 0
      %323 = vmatpush1.bf16.msra.mxu0 0
      %324 = vmatprep.mubr.bf16.mxu0 0
      %325 = vmatmul.mubr.bf16.gmra.mrb[0].mxu0 %v245
      %v326 = vpop.f32.mrb[0].mxu0
      %v327 = vadd.f32 %v218, %v326
      %v328 = vpop.f32.mrb[0].mxu0
      %v329 = vpop.f32.mrb[0].mxu0
      %v330 = vadd.f32 %v218, %v329
      %v331 = vpop.f32.mrb[0].mxu0
      %332 = vmatprep.mubr.bf16.mxu0 0
      %333 = vmatmul.mubr.bf16.gmra.mrb[0].mxu0 %v248
      %v334 = vpop.f32.mrb[0].mxu0
      %v335 = vadd.f32 %v218, %v334
      %v336 = vpop.f32.mrb[0].mxu0
      %v337 = vpop.f32.mrb[0].mxu0
      %v338 = vadd.f32 %v218, %v337
      %v339 = vpop.f32.mrb[0].mxu0
      %340 = vmatprep.mubr.bf16.mxu0 0
      %341 = vmatmul.mubr.bf16.gmra.mrb[0].mxu0 %v251
      %v342 = vpop.f32.mrb[0].mxu0
      %v343 = vadd.f32 %v218, %v342
      %v344 = vpop.f32.mrb[0].mxu0
      %v345 = vpop.f32.mrb[0].mxu0
      %v346 = vadd.f32 %v218, %v345
      %v347 = vpop.f32.mrb[0].mxu0
      %348 = vmatprep.mubr.bf16.mxu0 0
      %349 = vmatmul.mubr.bf16.gmra.mrb[0].mxu0 %v254
      %v350 = vpop.f32.mrb[0].mxu0
      %v351 = vadd.f32 %v218, %v350
      %v352 = vpop.f32.mrb[0].mxu0
      %v353 = vpop.f32.mrb[0].mxu0
      %v354 = vadd.f32 %v218, %v353
      %v355 = vpop.f32.mrb[0].mxu0
      %356 = vmatprep.mubr.bf16.mxu0 0
      %357 = vmatmul.mubr.bf16.gmra.mrb[0].mxu0 %v257
      %v358 = vpop.f32.mrb[0].mxu0
      %v359 = vadd.f32 %v218, %v358
      %v360 = vpop.f32.mrb[0].mxu0
      %v361 = vpop.f32.mrb[0].mxu0
      %v362 = vadd.f32 %v218, %v361
      %v363 = vpop.f32.mrb[0].mxu0
      %364 = vmatprep.mubr.bf16.mxu0 0
      %365 = vmatmul.mubr.bf16.gmra.mrb[0].mxu0 %v260
      %v366 = vpop.f32.mrb[0].mxu0
      %v367 = vadd.f32 %v218, %v366
      %v368 = vpop.f32.mrb[0].mxu0
      %v369 = vpop.f32.mrb[0].mxu0
      %v370 = vadd.f32 %v218, %v369
      %v371 = vpop.f32.mrb[0].mxu0
      %372 = vmatprep.mubr.bf16.mxu0 0
      %373 = vmatmul.mubr.bf16.gmra.mrb[0].mxu0 %v263
      %v374 = vpop.f32.mrb[0].mxu0
      %v375 = vadd.f32 %v218, %v374
      %v376 = vpop.f32.mrb[0].mxu0
      %v377 = vpop.f32.mrb[0].mxu0
      %v378 = vadd.f32 %v218, %v377
      %v379 = vpop.f32.mrb[0].mxu0
      %380 = vmatprep.mubr.bf16.mxu0 0
      %381 = vmatmul.mubr.bf16.gmra.mrb[0].mxu0 %v266
      %v382 = vpop.f32.mrb[0].mxu0
      %v383 = vadd.f32 %v218, %v382
      %v384 = vpop.f32.mrb[0].mxu0
      %v385 = vpop.f32.mrb[0].mxu0
      %v386 = vadd.f32 %v218, %v385
      %v387 = vpop.f32.mrb[0].mxu0
      %388 = vmatprep.mubr.bf16.mxu0 0
      %389 = vmatmul.mubr.bf16.gmra.mrb[0].mxu0 %v269
      %v390 = vpop.f32.mrb[0].mxu0
      %v391 = vadd.f32 %v218, %v390
      %v392 = vpop.f32.mrb[0].mxu0
      %v393 = vpop.f32.mrb[0].mxu0
      %v394 = vadd.f32 %v218, %v393
      %v395 = vpop.f32.mrb[0].mxu0
      %396 = vmatprep.mubr.bf16.mxu0 0
      %397 = vmatmul.mubr.bf16.gmra.mrb[0].mxu0 %v272
      %v398 = vpop.f32.mrb[0].mxu0
      %v399 = vadd.f32 %v218, %v398
      %v400 = vpop.f32.mrb[0].mxu0
      %v401 = vpop.f32.mrb[0].mxu0
      %v402 = vadd.f32 %v218, %v401
      %v403 = vpop.f32.mrb[0].mxu0
      %404 = vmatprep.mubr.bf16.mxu0 0
      %405 = vmatmul.mubr.bf16.gmra.mrb[0].mxu0 %v275
      %v406 = vpop.f32.mrb[0].mxu0
      %v407 = vadd.f32 %v218, %v406
      %v408 = vpop.f32.mrb[0].mxu0
      %v409 = vpop.f32.mrb[0].mxu0
      %v410 = vadd.f32 %v218, %v409
      %v411 = vpop.f32.mrb[0].mxu0
      %412 = vmatprep.mubr.bf16.mxu0 0
      %413 = vmatmul.mubr.bf16.gmra.mrb[0].mxu0 %v278
      %v414 = vpop.f32.mrb[0].mxu0
      %v415 = vadd.f32 %v218, %v414
      %v416 = vpop.f32.mrb[0].mxu0
      %v417 = vpop.f32.mrb[0].mxu0
      %v418 = vadd.f32 %v218, %v417
      %v419 = vpop.f32.mrb[0].mxu0
      %420 = vmatprep.mubr.bf16.mxu0 0
      %421 = vmatmul.mubr.bf16.gmra.mrb[0].mxu0 %v281
      %v422 = vpop.f32.mrb[0].mxu0
      %v423 = vadd.f32 %v218, %v422
      %v424 = vpop.f32.mrb[0].mxu0
      %v425 = vpop.f32.mrb[0].mxu0
      %v426 = vadd.f32 %v218, %v425
      %v427 = vpop.f32.mrb[0].mxu0
      %428 = vmatprep.mubr.bf16.mxu0 0
      %429 = vmatmul.mubr.bf16.gmra.mrb[0].mxu0 %v284
      %v430 = vpop.f32.mrb[0].mxu0
      %v431 = vadd.f32 %v218, %v430
      %v432 = vpop.f32.mrb[0].mxu0
      %v433 = vpop.f32.mrb[0].mxu0
      %v434 = vadd.f32 %v218, %v433
      %v435 = vpop.f32.mrb[0].mxu0
      %436 = vmatprep.mubr.bf16.mxu0 0
      %437 = vmatmul.mubr.bf16.gmra.mrb[0].mxu0 %v287
      %v438 = vpop.f32.mrb[0].mxu0
      %v439 = vadd.f32 %v218, %v438
      %v440 = vpop.f32.mrb[0].mxu0
      %v441 = vpop.f32.mrb[0].mxu0
      %v442 = vadd.f32 %v218, %v441
      %v443 = vpop.f32.mrb[0].mxu0
      %444 = vmatprep.mubr.bf16.mxu0 0
      %445 = vmatmul.mubr.bf16.gmra.mrb[0].mxu0 %v290
      %v446 = vpop.f32.mrb[0].mxu0
      %v447 = vadd.f32 %v218, %v446
      %v448 = vpop.f32.mrb[0].mxu0
      %v449 = vpop.f32.mrb[0].mxu0
      %v450 = vadd.f32 %v218, %v449
      %v451 = vpop.f32.mrb[0].mxu0
      %452 = vdwg.mxu0
      %v453 = vmax.f32 %v327, 0.0
      %v454 = vmax.f32 %v330, 0.0
      %v455 = vmax.f32 %v335, 0.0
      %v456 = vmax.f32 %v338, 0.0
      %v457 = vmax.f32 %v343, 0.0
      %v458 = vmax.f32 %v346, 0.0
      %v459 = vmax.f32 %v351, 0.0
      %v460 = vmax.f32 %v354, 0.0
      %v461 = vmax.f32 %v359, 0.0
      %v462 = vmax.f32 %v362, 0.0
      %v463 = vmax.f32 %v367, 0.0
      %v464 = vmax.f32 %v370, 0.0
      %v465 = vmax.f32 %v375, 0.0
      %v466 = vmax.f32 %v378, 0.0
      %v467 = vmax.f32 %v383, 0.0
      %v468 = vmax.f32 %v386, 0.0
      %v469 = vmax.f32 %v391, 0.0
      %v470 = vmax.f32 %v394, 0.0
      %v471 = vmax.f32 %v399, 0.0
      %v472 = vmax.f32 %v402, 0.0
      %v473 = vmax.f32 %v407, 0.0
      %v474 = vmax.f32 %v410, 0.0
      %v475 = vmax.f32 %v415, 0.0
      %v476 = vmax.f32 %v418, 0.0
      %v477 = vmax.f32 %v423, 0.0
      %v478 = vmax.f32 %v426, 0.0
      %v479 = vmax.f32 %v431, 0.0
      %v480 = vmax.f32 %v434, 0.0
      %v481 = vmax.f32 %v439, 0.0
      %v482 = vmax.f32 %v442, 0.0
      %v483 = vmax.f32 %v447, 0.0
      %v484 = vmax.f32 %v450, 0.0
      %v485 = vpack.c.bf16 %v454, %v453
      %v486 = vpack.c.bf16 %v456, %v455
      %v487 = vpack.c.bf16 %v458, %v457
      %v488 = vpack.c.bf16 %v460, %v459
      %v489 = vpack.c.bf16 %v462, %v461
      %v490 = vpack.c.bf16 %v464, %v463
      %v491 = vpack.c.bf16 %v466, %v465
      %v492 = vpack.c.bf16 %v468, %v467
      %v493 = vpack.c.bf16 %v470, %v469
      %v494 = vpack.c.bf16 %v472, %v471
      %v495 = vpack.c.bf16 %v474, %v473
      %v496 = vpack.c.bf16 %v476, %v475
      %v497 = vpack.c.bf16 %v478, %v477
      %v498 = vpack.c.bf16 %v480, %v479
      %v499 = vpack.c.bf16 %v482, %v481
      %v500 = vpack.c.bf16 %v484, %v483
      %501 = vrot.lane.b32.xlu0 %v235, 64
      %v502 = vpop.permute.xlu0 %501
      %503 = vrot.lane.b32.xlu0 %v236, 64
      %v504 = vpop.permute.xlu0 %503
      %505 = vrot.lane.b32.xlu0 %v237, 64
      %v506 = vpop.permute.xlu0 %505
      %507 = vrot.lane.b32.xlu0 %v238, 64
      %v508 = vpop.permute.xlu0 %507
      %514 = vrot.lane.b32.xlu0 %v218, 64
      %v515 = vpop.permute.xlu0 %514
      %v518 = vsel %vm243, %v485, 0
      %v521 = vsel %vm243, %v486, 0
      %v524 = vsel %vm243, %v487, 0
      %v527 = vsel %vm243, %v488, 0
      %v530 = vsel %vm243, %v489, 0
      %v533 = vsel %vm243, %v490, 0
      %v536 = vsel %vm243, %v491, 0
      %v539 = vsel %vm243, %v492, 0
      %v542 = vsel %vm243, %v493, 0
      %v545 = vsel %vm243, %v494, 0
      %v548 = vsel %vm243, %v495, 0
      %v551 = vsel %vm243, %v496, 0
      %v554 = vsel %vm243, %v497, 0
      %v557 = vsel %vm243, %v498, 0
      %v560 = vsel %vm243, %v499, 0
      %v563 = vsel %vm243, %v500, 0
      %565 = vmatprep.subr.bf16.mxu0 0
      %566 = vmatpush1.bf16.msra.mxu0 %v502
      %567 = vmatprep.subr.bf16.mxu0 0
      %568 = vmatpush1.bf16.msra.mxu0 %v504
      %569 = vmatprep.subr.bf16.mxu0 0
      %570 = vmatpush1.bf16.msra.mxu0 %v506
      %571 = vmatprep.subr.bf16.mxu0 0
      %572 = vmatpush1.bf16.msra.mxu0 %v508
      %573 = vmatprep.subr.bf16.mxu0 0
      %574 = vmatpush1.bf16.msra.mxu0 0
      %575 = vmatprep.subr.bf16.mxu0 0
      %576 = vmatpush1.bf16.msra.mxu0 0
      %577 = vmatprep.subr.bf16.mxu0 0
      %578 = vmatpush1.bf16.msra.mxu0 0
      %579 = vmatprep.subr.bf16.mxu0 0
      %580 = vmatpush1.bf16.msra.mxu0 0
      %581 = vmatprep.subr.bf16.mxu0 0
      %582 = vmatpush1.bf16.msra.mxu0 0
      %583 = vmatprep.subr.bf16.mxu0 0
      %584 = vmatpush1.bf16.msra.mxu0 0
      %585 = vmatprep.subr.bf16.mxu0 0
      %586 = vmatpush1.bf16.msra.mxu0 0
      %587 = vmatprep.subr.bf16.mxu0 0
      %588 = vmatpush1.bf16.msra.mxu0 0
      %589 = vmatprep.subr.bf16.mxu0 0
      %590 = vmatpush1.bf16.msra.mxu0 0
      %591 = vmatprep.subr.bf16.mxu0 0
      %592 = vmatpush1.bf16.msra.mxu0 0
      %593 = vmatprep.subr.bf16.mxu0 0
      %594 = vmatpush1.bf16.msra.mxu0 0
      %595 = vmatprep.subr.bf16.mxu0 0
      %596 = vmatpush1.bf16.msra.mxu0 0
      %597 = vmatprep.mubr.bf16.mxu0 0
      %598 = vmatmul.mubr.bf16.gmra.mrb[0].mxu0 %v518
      %v599 = vpop.f32.mrb[0].mxu0
      %v600 = vadd.f32 %v515, %v599
      %v601 = vpop.f32.mrb[0].mxu0
      %v602 = vpop.f32.mrb[0].mxu0
      %v603 = vadd.f32 %v515, %v602
      %v604 = vpop.f32.mrb[0].mxu0
      %605 = vmatprep.mubr.bf16.mxu0 0
      %606 = vmatmul.mubr.bf16.gmra.mrb[0].mxu0 %v521
      %v607 = vpop.f32.mrb[0].mxu0
      %v608 = vadd.f32 %v515, %v607
      %v609 = vpop.f32.mrb[0].mxu0
      %v610 = vpop.f32.mrb[0].mxu0
      %v611 = vadd.f32 %v515, %v610
      %v612 = vpop.f32.mrb[0].mxu0
      %613 = vmatprep.mubr.bf16.mxu0 0
      %614 = vmatmul.mubr.bf16.gmra.mrb[0].mxu0 %v524
      %v615 = vpop.f32.mrb[0].mxu0
      %v616 = vadd.f32 %v515, %v615
      %v617 = vpop.f32.mrb[0].mxu0
      %v618 = vpop.f32.mrb[0].mxu0
      %v619 = vadd.f32 %v515, %v618
      %v620 = vpop.f32.mrb[0].mxu0
      %621 = vmatprep.mubr.bf16.mxu0 0
      %622 = vmatmul.mubr.bf16.gmra.mrb[0].mxu0 %v527
      %v623 = vpop.f32.mrb[0].mxu0
      %v624 = vadd.f32 %v515, %v623
      %v625 = vpop.f32.mrb[0].mxu0
      %v626 = vpop.f32.mrb[0].mxu0
      %v627 = vadd.f32 %v515, %v626
      %v628 = vpop.f32.mrb[0].mxu0
      %629 = vmatprep.mubr.bf16.mxu0 0
      %630 = vmatmul.mubr.bf16.gmra.mrb[0].mxu0 %v530
      %v631 = vpop.f32.mrb[0].mxu0
      %v632 = vadd.f32 %v515, %v631
      %v633 = vpop.f32.mrb[0].mxu0
      %v634 = vpop.f32.mrb[0].mxu0
      %v635 = vadd.f32 %v515, %v634
      %v636 = vpop.f32.mrb[0].mxu0
      %637 = vmatprep.mubr.bf16.mxu0 0
      %638 = vmatmul.mubr.bf16.gmra.mrb[0].mxu0 %v533
      %v639 = vpop.f32.mrb[0].mxu0
      %v640 = vadd.f32 %v515, %v639
      %v641 = vpop.f32.mrb[0].mxu0
      %v642 = vpop.f32.mrb[0].mxu0
      %v643 = vadd.f32 %v515, %v642
      %v644 = vpop.f32.mrb[0].mxu0
      %645 = vmatprep.mubr.bf16.mxu0 0
      %646 = vmatmul.mubr.bf16.gmra.mrb[0].mxu0 %v536
      %v647 = vpop.f32.mrb[0].mxu0
      %v648 = vadd.f32 %v515, %v647
      %v649 = vpop.f32.mrb[0].mxu0
      %v650 = vpop.f32.mrb[0].mxu0
      %v651 = vadd.f32 %v515, %v650
      %v652 = vpop.f32.mrb[0].mxu0
      %653 = vmatprep.mubr.bf16.mxu0 0
      %654 = vmatmul.mubr.bf16.gmra.mrb[0].mxu0 %v539
      %v655 = vpop.f32.mrb[0].mxu0
      %v656 = vadd.f32 %v515, %v655
      %v657 = vpop.f32.mrb[0].mxu0
      %v658 = vpop.f32.mrb[0].mxu0
      %v659 = vadd.f32 %v515, %v658
      %v660 = vpop.f32.mrb[0].mxu0
      %661 = vmatprep.mubr.bf16.mxu0 0
      %662 = vmatmul.mubr.bf16.gmra.mrb[0].mxu0 %v542
      %v663 = vpop.f32.mrb[0].mxu0
      %v664 = vadd.f32 %v515, %v663
      %v665 = vpop.f32.mrb[0].mxu0
      %v666 = vpop.f32.mrb[0].mxu0
      %v667 = vadd.f32 %v515, %v666
      %v668 = vpop.f32.mrb[0].mxu0
      %669 = vmatprep.mubr.bf16.mxu0 0
      %670 = vmatmul.mubr.bf16.gmra.mrb[0].mxu0 %v545
      %v671 = vpop.f32.mrb[0].mxu0
      %v672 = vadd.f32 %v515, %v671
      %v673 = vpop.f32.mrb[0].mxu0
      %v674 = vpop.f32.mrb[0].mxu0
      %v675 = vadd.f32 %v515, %v674
      %v676 = vpop.f32.mrb[0].mxu0
      %677 = vmatprep.mubr.bf16.mxu0 0
      %678 = vmatmul.mubr.bf16.gmra.mrb[0].mxu0 %v548
      %v679 = vpop.f32.mrb[0].mxu0
      %v680 = vadd.f32 %v515, %v679
      %v681 = vpop.f32.mrb[0].mxu0
      %v682 = vpop.f32.mrb[0].mxu0
      %v683 = vadd.f32 %v515, %v682
      %v684 = vpop.f32.mrb[0].mxu0
      %685 = vmatprep.mubr.bf16.mxu0 0
      %686 = vmatmul.mubr.bf16.gmra.mrb[0].mxu0 %v551
      %v687 = vpop.f32.mrb[0].mxu0
      %v688 = vadd.f32 %v515, %v687
      %v689 = vpop.f32.mrb[0].mxu0
      %v690 = vpop.f32.mrb[0].mxu0
      %v691 = vadd.f32 %v515, %v690
      %v692 = vpop.f32.mrb[0].mxu0
      %693 = vmatprep.mubr.bf16.mxu0 0
      %694 = vmatmul.mubr.bf16.gmra.mrb[0].mxu0 %v554
      %v695 = vpop.f32.mrb[0].mxu0
      %v696 = vadd.f32 %v515, %v695
      %v697 = vpop.f32.mrb[0].mxu0
      %v698 = vpop.f32.mrb[0].mxu0
      %v699 = vadd.f32 %v515, %v698
      %v700 = vpop.f32.mrb[0].mxu0
      %701 = vmatprep.mubr.bf16.mxu0 0
      %702 = vmatmul.mubr.bf16.gmra.mrb[0].mxu0 %v557
      %v703 = vpop.f32.mrb[0].mxu0
      %v704 = vadd.f32 %v515, %v703
      %v705 = vpop.f32.mrb[0].mxu0
      %v706 = vpop.f32.mrb[0].mxu0
      %v707 = vadd.f32 %v515, %v706
      %v708 = vpop.f32.mrb[0].mxu0
      %709 = vmatprep.mubr.bf16.mxu0 0
      %710 = vmatmul.mubr.bf16.gmra.mrb[0].mxu0 %v560
      %v711 = vpop.f32.mrb[0].mxu0
      %v712 = vadd.f32 %v515, %v711
      %v713 = vpop.f32.mrb[0].mxu0
      %v714 = vpop.f32.mrb[0].mxu0
      %v715 = vadd.f32 %v515, %v714
      %v716 = vpop.f32.mrb[0].mxu0
      %717 = vmatprep.mubr.bf16.mxu0 0
      %718 = vmatmul.mubr.bf16.gmra.mrb[0].mxu0 %v563
      %v719 = vpop.f32.mrb[0].mxu0
      %v720 = vadd.f32 %v515, %v719
      %v721 = vpop.f32.mrb[0].mxu0
      %v722 = vpop.f32.mrb[0].mxu0
      %v723 = vadd.f32 %v515, %v722
      %v724 = vpop.f32.mrb[0].mxu0
      %725 = vdwg.mxu0
      %v726 = vmax.f32 %v600, 0.0
      %v727 = vmax.f32 %v603, 0.0
      %v728 = vmax.f32 %v608, 0.0
      %v729 = vmax.f32 %v611, 0.0
      %v730 = vmax.f32 %v616, 0.0
      %v731 = vmax.f32 %v619, 0.0
      %v732 = vmax.f32 %v624, 0.0
      %v733 = vmax.f32 %v627, 0.0
      %v734 = vmax.f32 %v632, 0.0
      %v735 = vmax.f32 %v635, 0.0
      %v736 = vmax.f32 %v640, 0.0
      %v737 = vmax.f32 %v643, 0.0
      %v738 = vmax.f32 %v648, 0.0
      %v739 = vmax.f32 %v651, 0.0
      %v740 = vmax.f32 %v656, 0.0
      %v741 = vmax.f32 %v659, 0.0
      %v742 = vmax.f32 %v664, 0.0
      %v743 = vmax.f32 %v667, 0.0
      %v744 = vmax.f32 %v672, 0.0
      %v745 = vmax.f32 %v675, 0.0
      %v746 = vmax.f32 %v680, 0.0
      %v747 = vmax.f32 %v683, 0.0
      %v748 = vmax.f32 %v688, 0.0
      %v749 = vmax.f32 %v691, 0.0
      %v750 = vmax.f32 %v696, 0.0
      %v751 = vmax.f32 %v699, 0.0
      %v752 = vmax.f32 %v704, 0.0
      %v753 = vmax.f32 %v707, 0.0
      %v754 = vmax.f32 %v712, 0.0
      %v755 = vmax.f32 %v715, 0.0
      %v756 = vmax.f32 %v720, 0.0
      %v757 = vmax.f32 %v723, 0.0
      %v758 = vpack.c.bf16 %v727, %v726
      %v759 = vpack.c.bf16 %v729, %v728
      %v760 = vpack.c.bf16 %v731, %v730
      %v761 = vpack.c.bf16 %v733, %v732
      %v762 = vpack.c.bf16 %v735, %v734
      %v763 = vpack.c.bf16 %v737, %v736
      %v764 = vpack.c.bf16 %v739, %v738
      %v765 = vpack.c.bf16 %v741, %v740
      %v766 = vpack.c.bf16 %v743, %v742
      %v767 = vpack.c.bf16 %v745, %v744
      %v768 = vpack.c.bf16 %v747, %v746
      %v769 = vpack.c.bf16 %v749, %v748
      %v770 = vpack.c.bf16 %v751, %v750
      %v771 = vpack.c.bf16 %v753, %v752
      %v772 = vpack.c.bf16 %v755, %v754
      %v773 = vpack.c.bf16 %v757, %v756
      %v774 = vlaneseq
      %v775 = vshrl.u32 %v774, 7
      %v776 = vsub.s32 0, %v775
      %v777 = vrot.slane %v214, %v776
      %v786 = vunpack.c.l.b16 %v204
      %v787 = vunpack.c.l.b16 %v205
      %v788 = vunpack.c.l.b16 %v206
      %v789 = vunpack.c.l.b16 %v207
      %v790 = vunpack.c.l.b16 %v208
      %v791 = vunpack.c.l.b16 %v209
      %v792 = vunpack.c.l.b16 %v210
      %v793 = vunpack.c.l.b16 %v211
      %v794 = vpack.c.b16 %v787, %v786
      %v795 = vpack.c.b16 %v789, %v788
      %v796 = vpack.c.b16 %v791, %v790
      %v797 = vpack.c.b16 %v793, %v792
      %v803 = vsel %vm243, %v758, 0
      %v806 = vsel %vm243, %v759, 0
      %v809 = vsel %vm243, %v760, 0
      %v812 = vsel %vm243, %v761, 0
      %v815 = vsel %vm243, %v762, 0
      %v818 = vsel %vm243, %v763, 0
      %v821 = vsel %vm243, %v764, 0
      %v824 = vsel %vm243, %v765, 0
      %v827 = vsel %vm243, %v766, 0
      %v830 = vsel %vm243, %v767, 0
      %v833 = vsel %vm243, %v768, 0
      %v836 = vsel %vm243, %v769, 0
      %v839 = vsel %vm243, %v770, 0
      %v842 = vsel %vm243, %v771, 0
      %v845 = vsel %vm243, %v772, 0
      %v848 = vsel %vm243, %v773, 0
      %850 = vmatprep.subr.bf16.mxu0 0
      %851 = vmatpush1.bf16.msra.mxu0 %v794
      %852 = vmatprep.subr.bf16.mxu0 0
      %853 = vmatpush1.bf16.msra.mxu0 %v795
      %854 = vmatprep.subr.bf16.mxu0 0
      %855 = vmatpush1.bf16.msra.mxu0 %v796
      %856 = vmatprep.subr.bf16.mxu0 0
      %857 = vmatpush1.bf16.msra.mxu0 %v797
      %858 = vmatprep.subr.bf16.mxu0 0
      %859 = vmatpush1.bf16.msra.mxu0 0
      %860 = vmatprep.subr.bf16.mxu0 0
      %861 = vmatpush1.bf16.msra.mxu0 0
      %862 = vmatprep.subr.bf16.mxu0 0
      %863 = vmatpush1.bf16.msra.mxu0 0
      %864 = vmatprep.subr.bf16.mxu0 0
      %865 = vmatpush1.bf16.msra.mxu0 0
      %866 = vmatprep.subr.bf16.mxu0 0
      %867 = vmatpush1.bf16.msra.mxu0 0
      %868 = vmatprep.subr.bf16.mxu0 0
      %869 = vmatpush1.bf16.msra.mxu0 0
      %870 = vmatprep.subr.bf16.mxu0 0
      %871 = vmatpush1.bf16.msra.mxu0 0
      %872 = vmatprep.subr.bf16.mxu0 0
      %873 = vmatpush1.bf16.msra.mxu0 0
      %874 = vmatprep.subr.bf16.mxu0 0
      %875 = vmatpush1.bf16.msra.mxu0 0
      %876 = vmatprep.subr.bf16.mxu0 0
      %877 = vmatpush1.bf16.msra.mxu0 0
      %878 = vmatprep.subr.bf16.mxu0 0
      %879 = vmatpush1.bf16.msra.mxu0 0
      %880 = vmatprep.subr.bf16.mxu0 0
      %881 = vmatpush1.bf16.msra.mxu0 0
      %882 = vmatprep.mubr.bf16.mxu0 0
      %883 = vmatmul.mubr.bf16.gmra.mrb[0].mxu0 %v803
      %v884 = vpop.f32.mrb[0].mxu0
      %v885 = vadd.f32 %v777, %v884
      %v886 = vpop.f32.mrb[0].mxu0
      %v887 = vpop.f32.mrb[0].mxu0
      %v888 = vadd.f32 %v777, %v887
      %v889 = vpop.f32.mrb[0].mxu0
      %890 = vmatprep.mubr.bf16.mxu0 0
      %891 = vmatmul.mubr.bf16.gmra.mrb[0].mxu0 %v806
      %v892 = vpop.f32.mrb[0].mxu0
      %v893 = vadd.f32 %v777, %v892
      %v894 = vpop.f32.mrb[0].mxu0
      %v895 = vpop.f32.mrb[0].mxu0
      %v896 = vadd.f32 %v777, %v895
      %v897 = vpop.f32.mrb[0].mxu0
      %898 = vmatprep.mubr.bf16.mxu0 0
      %899 = vmatmul.mubr.bf16.gmra.mrb[0].mxu0 %v809
      %v900 = vpop.f32.mrb[0].mxu0
      %v901 = vadd.f32 %v777, %v900
      %v902 = vpop.f32.mrb[0].mxu0
      %v903 = vpop.f32.mrb[0].mxu0
      %v904 = vadd.f32 %v777, %v903
      %v905 = vpop.f32.mrb[0].mxu0
      %906 = vmatprep.mubr.bf16.mxu0 0
      %907 = vmatmul.mubr.bf16.gmra.mrb[0].mxu0 %v812
      %v908 = vpop.f32.mrb[0].mxu0
      %v909 = vadd.f32 %v777, %v908
      %v910 = vpop.f32.mrb[0].mxu0
      %v911 = vpop.f32.mrb[0].mxu0
      %v912 = vadd.f32 %v777, %v911
      %v913 = vpop.f32.mrb[0].mxu0
      %914 = vmatprep.mubr.bf16.mxu0 0
      %915 = vmatmul.mubr.bf16.gmra.mrb[0].mxu0 %v815
      %v916 = vpop.f32.mrb[0].mxu0
      %v917 = vadd.f32 %v777, %v916
      %v918 = vpop.f32.mrb[0].mxu0
      %v919 = vpop.f32.mrb[0].mxu0
      %v920 = vadd.f32 %v777, %v919
      %v921 = vpop.f32.mrb[0].mxu0
      %922 = vmatprep.mubr.bf16.mxu0 0
      %923 = vmatmul.mubr.bf16.gmra.mrb[0].mxu0 %v818
      %v924 = vpop.f32.mrb[0].mxu0
      %v925 = vadd.f32 %v777, %v924
      %v926 = vpop.f32.mrb[0].mxu0
      %v927 = vpop.f32.mrb[0].mxu0
      %v928 = vadd.f32 %v777, %v927
      %v929 = vpop.f32.mrb[0].mxu0
      %930 = vmatprep.mubr.bf16.mxu0 0
      %931 = vmatmul.mubr.bf16.gmra.mrb[0].mxu0 %v821
      %v932 = vpop.f32.mrb[0].mxu0
      %v933 = vadd.f32 %v777, %v932
      %v934 = vpop.f32.mrb[0].mxu0
      %v935 = vpop.f32.mrb[0].mxu0
      %v936 = vadd.f32 %v777, %v935
      %v937 = vpop.f32.mrb[0].mxu0
      %938 = vmatprep.mubr.bf16.mxu0 0
      %939 = vmatmul.mubr.bf16.gmra.mrb[0].mxu0 %v824
      %v940 = vpop.f32.mrb[0].mxu0
      %v941 = vadd.f32 %v777, %v940
      %v942 = vpop.f32.mrb[0].mxu0
      %v943 = vpop.f32.mrb[0].mxu0
      %v944 = vadd.f32 %v777, %v943
      %v945 = vpop.f32.mrb[0].mxu0
      %946 = vmatprep.mubr.bf16.mxu0 0
      %947 = vmatmul.mubr.bf16.gmra.mrb[0].mxu0 %v827
      %v948 = vpop.f32.mrb[0].mxu0
      %v949 = vadd.f32 %v777, %v948
      %v950 = vpop.f32.mrb[0].mxu0
      %v951 = vpop.f32.mrb[0].mxu0
      %v952 = vadd.f32 %v777, %v951
      %v953 = vpop.f32.mrb[0].mxu0
      %954 = vmatprep.mubr.bf16.mxu0 0
      %955 = vmatmul.mubr.bf16.gmra.mrb[0].mxu0 %v830
      %v956 = vpop.f32.mrb[0].mxu0
      %v957 = vadd.f32 %v777, %v956
      %v958 = vpop.f32.mrb[0].mxu0
      %v959 = vpop.f32.mrb[0].mxu0
      %v960 = vadd.f32 %v777, %v959
      %v961 = vpop.f32.mrb[0].mxu0
      %962 = vmatprep.mubr.bf16.mxu0 0
      %963 = vmatmul.mubr.bf16.gmra.mrb[0].mxu0 %v833
      %v964 = vpop.f32.mrb[0].mxu0
      %v965 = vadd.f32 %v777, %v964
      %v966 = vpop.f32.mrb[0].mxu0
      %v967 = vpop.f32.mrb[0].mxu0
      %v968 = vadd.f32 %v777, %v967
      %v969 = vpop.f32.mrb[0].mxu0
      %970 = vmatprep.mubr.bf16.mxu0 0
      %971 = vmatmul.mubr.bf16.gmra.mrb[0].mxu0 %v836
      %v972 = vpop.f32.mrb[0].mxu0
      %v973 = vadd.f32 %v777, %v972
      %v974 = vpop.f32.mrb[0].mxu0
      %v975 = vpop.f32.mrb[0].mxu0
      %v976 = vadd.f32 %v777, %v975
      %v977 = vpop.f32.mrb[0].mxu0
      %978 = vmatprep.mubr.bf16.mxu0 0
      %979 = vmatmul.mubr.bf16.gmra.mrb[0].mxu0 %v839
      %v980 = vpop.f32.mrb[0].mxu0
      %v981 = vadd.f32 %v777, %v980
      %v982 = vpop.f32.mrb[0].mxu0
      %v983 = vpop.f32.mrb[0].mxu0
      %v984 = vadd.f32 %v777, %v983
      %v985 = vpop.f32.mrb[0].mxu0
      %986 = vmatprep.mubr.bf16.mxu0 0
      %987 = vmatmul.mubr.bf16.gmra.mrb[0].mxu0 %v842
      %v988 = vpop.f32.mrb[0].mxu0
      %v989 = vadd.f32 %v777, %v988
      %v990 = vpop.f32.mrb[0].mxu0
      %v991 = vpop.f32.mrb[0].mxu0
      %v992 = vadd.f32 %v777, %v991
      %v993 = vpop.f32.mrb[0].mxu0
      %994 = vmatprep.mubr.bf16.mxu0 0
      %995 = vmatmul.mubr.bf16.gmra.mrb[0].mxu0 %v845
      %v996 = vpop.f32.mrb[0].mxu0
      %v997 = vadd.f32 %v777, %v996
      %v998 = vpop.f32.mrb[0].mxu0
      %v999 = vpop.f32.mrb[0].mxu0
      %v1000 = vadd.f32 %v777, %v999
      %v1001 = vpop.f32.mrb[0].mxu0
      %1002 = vmatprep.mubr.bf16.mxu0 0
      %1003 = vmatmul.mubr.bf16.gmra.mrb[0].mxu0 %v848
      %v1004 = vpop.f32.mrb[0].mxu0
      %v1005 = vadd.f32 %v777, %v1004
      %v1006 = vpop.f32.mrb[0].mxu0
      %v1007 = vpop.f32.mrb[0].mxu0
      %v1008 = vadd.f32 %v777, %v1007
      %v1009 = vpop.f32.mrb[0].mxu0
      %1010 = vdwg.mxu0
      %v1011 = vmax.f32 %v885, 0.0
      %v1012 = vmax.f32 %v888, 0.0
      %v1013 = vmax.f32 %v893, 0.0
      %v1014 = vmax.f32 %v896, 0.0
      %v1015 = vmax.f32 %v901, 0.0
      %v1016 = vmax.f32 %v904, 0.0
      %v1017 = vmax.f32 %v909, 0.0
      %v1018 = vmax.f32 %v912, 0.0
      %v1019 = vmax.f32 %v917, 0.0
      %v1020 = vmax.f32 %v920, 0.0
      %v1021 = vmax.f32 %v925, 0.0
      %v1022 = vmax.f32 %v928, 0.0
      %v1023 = vmax.f32 %v933, 0.0
      %v1024 = vmax.f32 %v936, 0.0
      %v1025 = vmax.f32 %v941, 0.0
      %v1026 = vmax.f32 %v944, 0.0
      %v1027 = vmax.f32 %v949, 0.0
      %v1028 = vmax.f32 %v952, 0.0
      %v1029 = vmax.f32 %v957, 0.0
      %v1030 = vmax.f32 %v960, 0.0
      %v1031 = vmax.f32 %v965, 0.0
      %v1032 = vmax.f32 %v968, 0.0
      %v1033 = vmax.f32 %v973, 0.0
      %v1034 = vmax.f32 %v976, 0.0
      %v1035 = vmax.f32 %v981, 0.0
      %v1036 = vmax.f32 %v984, 0.0
      %v1037 = vmax.f32 %v989, 0.0
      %v1038 = vmax.f32 %v992, 0.0
      %v1039 = vmax.f32 %v997, 0.0
      %v1040 = vmax.f32 %v1000, 0.0
      %v1041 = vmax.f32 %v1005, 0.0
      %v1042 = vmax.f32 %v1008, 0.0
      %v1043 = vpack.c.bf16 %v1012, %v1011
      %v1044 = vpack.c.bf16 %v1014, %v1013
      %v1045 = vpack.c.bf16 %v1016, %v1015
      %v1046 = vpack.c.bf16 %v1018, %v1017
      %v1047 = vpack.c.bf16 %v1020, %v1019
      %v1048 = vpack.c.bf16 %v1022, %v1021
      %v1049 = vpack.c.bf16 %v1024, %v1023
      %v1050 = vpack.c.bf16 %v1026, %v1025
      %v1051 = vpack.c.bf16 %v1028, %v1027
      %v1052 = vpack.c.bf16 %v1030, %v1029
      %v1053 = vpack.c.bf16 %v1032, %v1031
      %v1054 = vpack.c.bf16 %v1034, %v1033
      %v1055 = vpack.c.bf16 %v1036, %v1035
      %v1056 = vpack.c.bf16 %v1038, %v1037
      %v1057 = vpack.c.bf16 %v1040, %v1039
      %v1058 = vpack.c.bf16 %v1042, %v1041
      %1059 = vrot.lane.b32.xlu0 %v794, 64
      %v1060 = vpop.permute.xlu0 %1059
      %1061 = vrot.lane.b32.xlu0 %v795, 64
      %v1062 = vpop.permute.xlu0 %1061
      %1063 = vrot.lane.b32.xlu0 %v796, 64
      %v1064 = vpop.permute.xlu0 %1063
      %1065 = vrot.lane.b32.xlu0 %v797, 64
      %v1066 = vpop.permute.xlu0 %1065
      %1072 = vrot.lane.b32.xlu0 %v777, 64
      %v1073 = vpop.permute.xlu0 %1072
      %v1076 = vsel %vm243, %v1043, 0
      %v1079 = vsel %vm243, %v1044, 0
      %v1082 = vsel %vm243, %v1045, 0
      %v1085 = vsel %vm243, %v1046, 0
      %v1088 = vsel %vm243, %v1047, 0
      %v1091 = vsel %vm243, %v1048, 0
      %v1094 = vsel %vm243, %v1049, 0
      %v1097 = vsel %vm243, %v1050, 0
      %v1100 = vsel %vm243, %v1051, 0
      %v1103 = vsel %vm243, %v1052, 0
      %v1106 = vsel %vm243, %v1053, 0
      %v1109 = vsel %vm243, %v1054, 0
      %v1112 = vsel %vm243, %v1055, 0
      %v1115 = vsel %vm243, %v1056, 0
      %v1118 = vsel %vm243, %v1057, 0
      %v1121 = vsel %vm243, %v1058, 0
      %1123 = vmatprep.subr.bf16.mxu0 0
      %1124 = vmatpush1.bf16.msra.mxu0 %v1060
      %1125 = vmatprep.subr.bf16.mxu0 0
      %1126 = vmatpush1.bf16.msra.mxu0 %v1062
      %1127 = vmatprep.subr.bf16.mxu0 0
      %1128 = vmatpush1.bf16.msra.mxu0 %v1064
      %1129 = vmatprep.subr.bf16.mxu0 0
      %1130 = vmatpush1.bf16.msra.mxu0 %v1066
      %1131 = vmatprep.subr.bf16.mxu0 0
      %1132 = vmatpush1.bf16.msra.mxu0 0
      %1133 = vmatprep.subr.bf16.mxu0 0
      %1134 = vmatpush1.bf16.msra.mxu0 0
      %1135 = vmatprep.subr.bf16.mxu0 0
      %1136 = vmatpush1.bf16.msra.mxu0 0
      %1137 = vmatprep.subr.bf16.mxu0 0
      %1138 = vmatpush1.bf16.msra.mxu0 0
      %1139 = vmatprep.subr.bf16.mxu0 0
      %1140 = vmatpush1.bf16.msra.mxu0 0
      %1141 = vmatprep.subr.bf16.mxu0 0
      %1142 = vmatpush1.bf16.msra.mxu0 0
      %1143 = vmatprep.subr.bf16.mxu0 0
      %1144 = vmatpush1.bf16.msra.mxu0 0
      %1145 = vmatprep.subr.bf16.mxu0 0
      %1146 = vmatpush1.bf16.msra.mxu0 0
      %1147 = vmatprep.subr.bf16.mxu0 0
      %1148 = vmatpush1.bf16.msra.mxu0 0
      %1149 = vmatprep.subr.bf16.mxu0 0
      %1150 = vmatpush1.bf16.msra.mxu0 0
      %1151 = vmatprep.subr.bf16.mxu0 0
      %1152 = vmatpush1.bf16.msra.mxu0 0
      %1153 = vmatprep.subr.bf16.mxu0 0
      %1154 = vmatpush1.bf16.msra.mxu0 0
      %1155 = vmatprep.mubr.bf16.mxu0 0
      %1156 = vmatmul.mubr.bf16.gmra.mrb[0].mxu0 %v1076
      %v1157 = vpop.f32.mrb[0].mxu0
      %v1158 = vadd.f32 %v1073, %v1157
      %v1159 = vpop.f32.mrb[0].mxu0
      %v1160 = vpop.f32.mrb[0].mxu0
      %v1161 = vadd.f32 %v1073, %v1160
      %v1162 = vpop.f32.mrb[0].mxu0
      %1163 = vmatprep.mubr.bf16.mxu0 0
      %1164 = vmatmul.mubr.bf16.gmra.mrb[0].mxu0 %v1079
      %v1165 = vpop.f32.mrb[0].mxu0
      %v1166 = vadd.f32 %v1073, %v1165
      %v1167 = vpop.f32.mrb[0].mxu0
      %v1168 = vpop.f32.mrb[0].mxu0
      %v1169 = vadd.f32 %v1073, %v1168
      %v1170 = vpop.f32.mrb[0].mxu0
      %1171 = vmatprep.mubr.bf16.mxu0 0
      %1172 = vmatmul.mubr.bf16.gmra.mrb[0].mxu0 %v1082
      %v1173 = vpop.f32.mrb[0].mxu0
      %v1174 = vadd.f32 %v1073, %v1173
      %v1175 = vpop.f32.mrb[0].mxu0
      %v1176 = vpop.f32.mrb[0].mxu0
      %v1177 = vadd.f32 %v1073, %v1176
      %v1178 = vpop.f32.mrb[0].mxu0
      %1179 = vmatprep.mubr.bf16.mxu0 0
      %1180 = vmatmul.mubr.bf16.gmra.mrb[0].mxu0 %v1085
      %v1181 = vpop.f32.mrb[0].mxu0
      %v1182 = vadd.f32 %v1073, %v1181
      %v1183 = vpop.f32.mrb[0].mxu0
      %v1184 = vpop.f32.mrb[0].mxu0
      %v1185 = vadd.f32 %v1073, %v1184
      %v1186 = vpop.f32.mrb[0].mxu0
      %1187 = vmatprep.mubr.bf16.mxu0 0
      %1188 = vmatmul.mubr.bf16.gmra.mrb[0].mxu0 %v1088
      %v1189 = vpop.f32.mrb[0].mxu0
      %v1190 = vadd.f32 %v1073, %v1189
      %v1191 = vpop.f32.mrb[0].mxu0
      %v1192 = vpop.f32.mrb[0].mxu0
      %v1193 = vadd.f32 %v1073, %v1192
      %v1194 = vpop.f32.mrb[0].mxu0
      %1195 = vmatprep.mubr.bf16.mxu0 0
      %1196 = vmatmul.mubr.bf16.gmra.mrb[0].mxu0 %v1091
      %v1197 = vpop.f32.mrb[0].mxu0
      %v1198 = vadd.f32 %v1073, %v1197
      %v1199 = vpop.f32.mrb[0].mxu0
      %v1200 = vpop.f32.mrb[0].mxu0
      %v1201 = vadd.f32 %v1073, %v1200
      %v1202 = vpop.f32.mrb[0].mxu0
      %1203 = vmatprep.mubr.bf16.mxu0 0
      %1204 = vmatmul.mubr.bf16.gmra.mrb[0].mxu0 %v1094
      %v1205 = vpop.f32.mrb[0].mxu0
      %v1206 = vadd.f32 %v1073, %v1205
      %v1207 = vpop.f32.mrb[0].mxu0
      %v1208 = vpop.f32.mrb[0].mxu0
      %v1209 = vadd.f32 %v1073, %v1208
      %v1210 = vpop.f32.mrb[0].mxu0
      %1211 = vmatprep.mubr.bf16.mxu0 0
      %1212 = vmatmul.mubr.bf16.gmra.mrb[0].mxu0 %v1097
      %v1213 = vpop.f32.mrb[0].mxu0
      %v1214 = vadd.f32 %v1073, %v1213
      %v1215 = vpop.f32.mrb[0].mxu0
      %v1216 = vpop.f32.mrb[0].mxu0
      %v1217 = vadd.f32 %v1073, %v1216
      %v1218 = vpop.f32.mrb[0].mxu0
      %1219 = vmatprep.mubr.bf16.mxu0 0
      %1220 = vmatmul.mubr.bf16.gmra.mrb[0].mxu0 %v1100
      %v1221 = vpop.f32.mrb[0].mxu0
      %v1222 = vadd.f32 %v1073, %v1221
      %v1223 = vpop.f32.mrb[0].mxu0
      %v1224 = vpop.f32.mrb[0].mxu0
      %v1225 = vadd.f32 %v1073, %v1224
      %v1226 = vpop.f32.mrb[0].mxu0
      %1227 = vmatprep.mubr.bf16.mxu0 0
      %1228 = vmatmul.mubr.bf16.gmra.mrb[0].mxu0 %v1103
      %v1229 = vpop.f32.mrb[0].mxu0
      %v1230 = vadd.f32 %v1073, %v1229
      %v1231 = vpop.f32.mrb[0].mxu0
      %v1232 = vpop.f32.mrb[0].mxu0
      %v1233 = vadd.f32 %v1073, %v1232
      %v1234 = vpop.f32.mrb[0].mxu0
      %1235 = vmatprep.mubr.bf16.mxu0 0
      %1236 = vmatmul.mubr.bf16.gmra.mrb[0].mxu0 %v1106
      %v1237 = vpop.f32.mrb[0].mxu0
      %v1238 = vadd.f32 %v1073, %v1237
      %v1239 = vpop.f32.mrb[0].mxu0
      %v1240 = vpop.f32.mrb[0].mxu0
      %v1241 = vadd.f32 %v1073, %v1240
      %v1242 = vpop.f32.mrb[0].mxu0
      %1243 = vmatprep.mubr.bf16.mxu0 0
      %1244 = vmatmul.mubr.bf16.gmra.mrb[0].mxu0 %v1109
      %v1245 = vpop.f32.mrb[0].mxu0
      %v1246 = vadd.f32 %v1073, %v1245
      %v1247 = vpop.f32.mrb[0].mxu0
      %v1248 = vpop.f32.mrb[0].mxu0
      %v1249 = vadd.f32 %v1073, %v1248
      %v1250 = vpop.f32.mrb[0].mxu0
      %1251 = vmatprep.mubr.bf16.mxu0 0
      %1252 = vmatmul.mubr.bf16.gmra.mrb[0].mxu0 %v1112
      %v1253 = vpop.f32.mrb[0].mxu0
      %v1254 = vadd.f32 %v1073, %v1253
      %v1255 = vpop.f32.mrb[0].mxu0
      %v1256 = vpop.f32.mrb[0].mxu0
      %v1257 = vadd.f32 %v1073, %v1256
      %v1258 = vpop.f32.mrb[0].mxu0
      %1259 = vmatprep.mubr.bf16.mxu0 0
      %1260 = vmatmul.mubr.bf16.gmra.mrb[0].mxu0 %v1115
      %v1261 = vpop.f32.mrb[0].mxu0
      %v1262 = vadd.f32 %v1073, %v1261
      %v1263 = vpop.f32.mrb[0].mxu0
      %v1264 = vpop.f32.mrb[0].mxu0
      %v1265 = vadd.f32 %v1073, %v1264
      %v1266 = vpop.f32.mrb[0].mxu0
      %1267 = vmatprep.mubr.bf16.mxu0 0
      %1268 = vmatmul.mubr.bf16.gmra.mrb[0].mxu0 %v1118
      %v1269 = vpop.f32.mrb[0].mxu0
      %v1270 = vadd.f32 %v1073, %v1269
      %v1271 = vpop.f32.mrb[0].mxu0
      %v1272 = vpop.f32.mrb[0].mxu0
      %v1273 = vadd.f32 %v1073, %v1272
      %v1274 = vpop.f32.mrb[0].mxu0
      %1275 = vmatprep.mubr.bf16.mxu0 0
      %1276 = vmatmul.mubr.bf16.gmra.mrb[0].mxu0 %v1121
      %v1277 = vpop.f32.mrb[0].mxu0
      %v1278 = vadd.f32 %v1073, %v1277
      %v1279 = vpop.f32.mrb[0].mxu0
      %v1280 = vpop.f32.mrb[0].mxu0
      %v1281 = vadd.f32 %v1073, %v1280
      %v1282 = vpop.f32.mrb[0].mxu0
      %1283 = vdwg.mxu0
      %v1284 = vsub.f32 0.0, %v1158
      %v1285 = vsub.f32 0.0, %v1161
      %v1286 = vsub.f32 0.0, %v1166
      %v1287 = vsub.f32 0.0, %v1169
      %v1288 = vsub.f32 0.0, %v1174
      %v1289 = vsub.f32 0.0, %v1177
      %v1290 = vsub.f32 0.0, %v1182
      %v1291 = vsub.f32 0.0, %v1185
      %v1292 = vsub.f32 0.0, %v1190
      %v1293 = vsub.f32 0.0, %v1193
      %v1294 = vsub.f32 0.0, %v1198
      %v1295 = vsub.f32 0.0, %v1201
      %v1296 = vsub.f32 0.0, %v1206
      %v1297 = vsub.f32 0.0, %v1209
      %v1298 = vsub.f32 0.0, %v1214
      %v1299 = vsub.f32 0.0, %v1217
      %v1300 = vsub.f32 0.0, %v1222
      %v1301 = vsub.f32 0.0, %v1225
      %v1302 = vsub.f32 0.0, %v1230
      %v1303 = vsub.f32 0.0, %v1233
      %v1304 = vsub.f32 0.0, %v1238
      %v1305 = vsub.f32 0.0, %v1241
      %v1306 = vsub.f32 0.0, %v1246
      %v1307 = vsub.f32 0.0, %v1249
      %v1308 = vsub.f32 0.0, %v1254
      %v1309 = vsub.f32 0.0, %v1257
      %v1310 = vsub.f32 0.0, %v1262
      %v1311 = vsub.f32 0.0, %v1265
      %v1312 = vsub.f32 0.0, %v1270
      %v1313 = vsub.f32 0.0, %v1273
      %v1314 = vsub.f32 0.0, %v1278
      %v1315 = vsub.f32 0.0, %v1281
      %v1316 = vmul.f32 %v1284, 1.442695
      %v1317 = vpow.pop %v1316
      %v1318 = vmul.f32 %v1285, 1.442695
      %v1319 = vpow.pop %v1318
      %v1320 = vmul.f32 %v1286, 1.442695
      %v1321 = vpow.pop %v1320
      %v1322 = vmul.f32 %v1287, 1.442695
      %v1323 = vpow.pop %v1322
      %v1324 = vmul.f32 %v1288, 1.442695
      %v1325 = vpow.pop %v1324
      %v1326 = vmul.f32 %v1289, 1.442695
      %v1327 = vpow.pop %v1326
      %v1328 = vmul.f32 %v1290, 1.442695
      %v1329 = vpow.pop %v1328
      %v1330 = vmul.f32 %v1291, 1.442695
      %v1331 = vpow.pop %v1330
      %v1332 = vmul.f32 %v1292, 1.442695
      %v1333 = vpow.pop %v1332
      %v1334 = vmul.f32 %v1293, 1.442695
      %v1335 = vpow.pop %v1334
      %v1336 = vmul.f32 %v1294, 1.442695
      %v1337 = vpow.pop %v1336
      %v1338 = vmul.f32 %v1295, 1.442695
      %v1339 = vpow.pop %v1338
      %v1340 = vmul.f32 %v1296, 1.442695
      %v1341 = vpow.pop %v1340
      %v1342 = vmul.f32 %v1297, 1.442695
      %v1343 = vpow.pop %v1342
      %v1344 = vmul.f32 %v1298, 1.442695
      %v1345 = vpow.pop %v1344
      %v1346 = vmul.f32 %v1299, 1.442695
      %v1347 = vpow.pop %v1346
      %v1348 = vmul.f32 %v1300, 1.442695
      %v1349 = vpow.pop %v1348
      %v1350 = vmul.f32 %v1301, 1.442695
      %v1351 = vpow.pop %v1350
      %v1352 = vmul.f32 %v1302, 1.442695
      %v1353 = vpow.pop %v1352
      %v1354 = vmul.f32 %v1303, 1.442695
      %v1355 = vpow.pop %v1354
      %v1356 = vmul.f32 %v1304, 1.442695
      %v1357 = vpow.pop %v1356
      %v1358 = vmul.f32 %v1305, 1.442695
      %v1359 = vpow.pop %v1358
      %v1360 = vmul.f32 %v1306, 1.442695
      %v1361 = vpow.pop %v1360
      %v1362 = vmul.f32 %v1307, 1.442695
      %v1363 = vpow.pop %v1362
      %v1364 = vmul.f32 %v1308, 1.442695
      %v1365 = vpow.pop %v1364
      %v1366 = vmul.f32 %v1309, 1.442695
      %v1367 = vpow.pop %v1366
      %v1368 = vmul.f32 %v1310, 1.442695
      %v1369 = vpow.pop %v1368
      %v1370 = vmul.f32 %v1311, 1.442695
      %v1371 = vpow.pop %v1370
      %v1372 = vmul.f32 %v1312, 1.442695
      %v1373 = vpow.pop %v1372
      %v1374 = vmul.f32 %v1313, 1.442695
      %v1375 = vpow.pop %v1374
      %v1376 = vmul.f32 %v1314, 1.442695
      %v1377 = vpow.pop %v1376
      %v1378 = vmul.f32 %v1315, 1.442695
      %v1379 = vpow.pop %v1378
      %v1380 = vadd.f32 %v1317, 1.0
      %v1381 = vadd.f32 %v1319, 1.0
      %v1382 = vadd.f32 %v1321, 1.0
      %v1383 = vadd.f32 %v1323, 1.0
      %v1384 = vadd.f32 %v1325, 1.0
      %v1385 = vadd.f32 %v1327, 1.0
      %v1386 = vadd.f32 %v1329, 1.0
      %v1387 = vadd.f32 %v1331, 1.0
      %v1388 = vadd.f32 %v1333, 1.0
      %v1389 = vadd.f32 %v1335, 1.0
      %v1390 = vadd.f32 %v1337, 1.0
      %v1391 = vadd.f32 %v1339, 1.0
      %v1392 = vadd.f32 %v1341, 1.0
      %v1393 = vadd.f32 %v1343, 1.0
      %v1394 = vadd.f32 %v1345, 1.0
      %v1395 = vadd.f32 %v1347, 1.0
      %v1396 = vadd.f32 %v1349, 1.0
      %v1397 = vadd.f32 %v1351, 1.0
      %v1398 = vadd.f32 %v1353, 1.0
      %v1399 = vadd.f32 %v1355, 1.0
      %v1400 = vadd.f32 %v1357, 1.0
      %v1401 = vadd.f32 %v1359, 1.0
      %v1402 = vadd.f32 %v1361, 1.0
      %v1403 = vadd.f32 %v1363, 1.0
      %v1404 = vadd.f32 %v1365, 1.0
      %v1405 = vadd.f32 %v1367, 1.0
      %v1406 = vadd.f32 %v1369, 1.0
      %v1407 = vadd.f32 %v1371, 1.0
      %v1408 = vadd.f32 %v1373, 1.0
      %v1409 = vadd.f32 %v1375, 1.0
      %v1410 = vadd.f32 %v1377, 1.0
      %v1411 = vadd.f32 %v1379, 1.0
      %v1412 = vrcp.pop %v1380
      %v1413 = vrcp.pop %v1381
      %v1414 = vrcp.pop %v1382
      %v1415 = vrcp.pop %v1383
      %v1416 = vrcp.pop %v1384
      %v1417 = vrcp.pop %v1385
      %v1418 = vrcp.pop %v1386
      %v1419 = vrcp.pop %v1387
      %v1420 = vrcp.pop %v1388
      %v1421 = vrcp.pop %v1389
      %v1422 = vrcp.pop %v1390
      %v1423 = vrcp.pop %v1391
      %v1424 = vrcp.pop %v1392
      %v1425 = vrcp.pop %v1393
      %v1426 = vrcp.pop %v1394
      %v1427 = vrcp.pop %v1395
      %v1428 = vrcp.pop %v1396
      %v1429 = vrcp.pop %v1397
      %v1430 = vrcp.pop %v1398
      %v1431 = vrcp.pop %v1399
      %v1432 = vrcp.pop %v1400
      %v1433 = vrcp.pop %v1401
      %v1434 = vrcp.pop %v1402
      %v1435 = vrcp.pop %v1403
      %v1436 = vrcp.pop %v1404
      %v1437 = vrcp.pop %v1405
      %v1438 = vrcp.pop %v1406
      %v1439 = vrcp.pop %v1407
      %v1440 = vrcp.pop %v1408
      %v1441 = vrcp.pop %v1409
      %v1442 = vrcp.pop %v1410
      %v1443 = vrcp.pop %v1411
      %vm1444 = vcmask 23552
      %1445 = vst.msk [vmem:[%s145] sm:$0xff] %vm1444, %v1412
      %1446 = vst.msk [vmem:[%s145 + $0x8] sm:$0xff] %vm1444, %v1413
      %1447 = vst.msk [vmem:[%s145 + $0x10] sm:$0xff] %vm1444, %v1414
      %1448 = vst.msk [vmem:[%s145 + $0x18] sm:$0xff] %vm1444, %v1415
      %1449 = vst.msk [vmem:[%s145 + $0x20] sm:$0xff] %vm1444, %v1416
      %1450 = vst.msk [vmem:[%s145 + $0x28] sm:$0xff] %vm1444, %v1417
      %1451 = vst.msk [vmem:[%s145 + $0x30] sm:$0xff] %vm1444, %v1418
      %1452 = vst.msk [vmem:[%s145 + $0x38] sm:$0xff] %vm1444, %v1419
      %1453 = vst.msk [vmem:[%s145 + $0x40] sm:$0xff] %vm1444, %v1420
      %1454 = vst.msk [vmem:[%s145 + $0x48] sm:$0xff] %vm1444, %v1421
      %1455 = vst.msk [vmem:[%s145 + $0x50] sm:$0xff] %vm1444, %v1422
      %1456 = vst.msk [vmem:[%s145 + $0x58] sm:$0xff] %vm1444, %v1423
      %1457 = vst.msk [vmem:[%s145 + $0x60] sm:$0xff] %vm1444, %v1424
      %1458 = vst.msk [vmem:[%s145 + $0x68] sm:$0xff] %vm1444, %v1425
      %1459 = vst.msk [vmem:[%s145 + $0x70] sm:$0xff] %vm1444, %v1426
      %1460 = vst.msk [vmem:[%s145 + $0x78] sm:$0xff] %vm1444, %v1427
      %1461 = vst.msk [vmem:[%s145 + $0x80] sm:$0xff] %vm1444, %v1428
      %1462 = vst.msk [vmem:[%s145 + $0x88] sm:$0xff] %vm1444, %v1429
      %1463 = vst.msk [vmem:[%s145 + $0x90] sm:$0xff] %vm1444, %v1430
      %1464 = vst.msk [vmem:[%s145 + $0x98] sm:$0xff] %vm1444, %v1431
      %1465 = vst.msk [vmem:[%s145 + $0xa0] sm:$0xff] %vm1444, %v1432
      %1466 = vst.msk [vmem:[%s145 + $0xa8] sm:$0xff] %vm1444, %v1433
      %1467 = vst.msk [vmem:[%s145 + $0xb0] sm:$0xff] %vm1444, %v1434
      %1468 = vst.msk [vmem:[%s145 + $0xb8] sm:$0xff] %vm1444, %v1435
      %1469 = vst.msk [vmem:[%s145 + $0xc0] sm:$0xff] %vm1444, %v1436
      %1470 = vst.msk [vmem:[%s145 + $0xc8] sm:$0xff] %vm1444, %v1437
      %1471 = vst.msk [vmem:[%s145 + $0xd0] sm:$0xff] %vm1444, %v1438
      %1472 = vst.msk [vmem:[%s145 + $0xd8] sm:$0xff] %vm1444, %v1439
      %1473 = vst.msk [vmem:[%s145 + $0xe0] sm:$0xff] %vm1444, %v1440
      %1474 = vst.msk [vmem:[%s145 + $0xe8] sm:$0xff] %vm1444, %v1441
      %1475 = vst.msk [vmem:[%s145 + $0xf0] sm:$0xff] %vm1444, %v1442
      %1476 = vst.msk [vmem:[%s145 + $0xf8] sm:$0xff] %vm1444, %v1443
      %s1477 = smul.u32 32, %s13
      %p1478 = scmp.lt.s32.totalorder %s1477, 127
      %s1479 = scalar_select %p1478, %s1477, 127
      %s1480 = smul.addr %s1479, 8
      %s1481 = scalar_lea.vmem %s2, %s1480
      // Predicated region
      $region29: #{tpu_custom_call.1} parent=27 // pred_check
        %p1482 = pneg %p78
      $region30: #{tpu_custom_call.1} parent=27 // pred_check_branch
        %1484 = sbr.rel (%p1482) target = $region32
      $region31: #{tpu_custom_call.1} parent=27 // pred_region
        %s1485 = smul.u32 32, %s13
      $region32: #{tpu_custom_call.1} parent=27 // pred_fallthru
        _
    $region28: #{tpu_custom_call.1} parent=5 // pred_fallthru
      _
    %p1486 = scmp.le.s32.totalorder 2, %s8
    // Predicated region
    $region33: #{tpu_custom_call.1} parent=5 // pred_check
      %p1487 = pneg %p1486
    $region34: #{tpu_custom_call.1} parent=5 // pred_check_branch
      %1489 = sbr.rel (%p1487) target = $region36
    $region35: #{tpu_custom_call.1} parent=5 // pred_region
      %s1490 = ssub.s32 %s8, 2
      // Predicated region
      $region37: #{tpu_custom_call.1} parent=35 // pred_check
        %p1491 = pneg %p84
      $region38: #{tpu_custom_call.1} parent=35 // pred_check_branch
        %1493 = sbr.rel (%p1491) target = $region40
      $region39: #{tpu_custom_call.1} parent=35 // pred_region
        %s1494 = smul.u32 32, %s14
        %p1495 = scmp.lt.s32.totalorder %s1494, 127
        %s1496 = scalar_select %p1495, %s1494, 127
        %s1497 = smul.addr %s1496, 8
        %s1498 = scalar_lea.vmem %s2, %s1497
      $region40: #{tpu_custom_call.1} parent=35 // pred_fallthru
        _
    $region36: #{tpu_custom_call.1} parent=5 // pred_fallthru
      _
  $region6: #{tpu_custom_call.1} parent=0 // loop_footer
    %s12 = sadd.s32 1, %s8
  $region7: #{tpu_custom_call.1} parent=0 // loop_footer_branch
    %7 = sbr.rel target = $region3
  $region8: #{tpu_custom_call.1} parent=0 // loop_exit
    _

</llo_original>
